<compile_context>
chip_gen: v7x
topology: tpu7x:2x2x1
jax: 0.10.0
libtpu: 0.0.40
codegen_flags: <defaults>
</compile_context>

<pallas_src>
import jax
import jax.numpy as jnp
from jax.experimental import pallas as pl
from jax.experimental.pallas import tpu as pltpu


def _round_up(x, m):
    return ((x + m - 1) // m) * m


def mlp_forward(x, w1, b1, w2, b2, w3, b3, *, tile_b=512,
                matmul_dtype=jnp.bfloat16):
    """x: (B, in).  Weights given as (in, out); biases as (out,)."""
    B, d_in = x.shape
    hidden = w1.shape[1]
    out_dim = w3.shape[1]

    # fc1 goes to the VPU (unrolled broadcast FMAs) when the contraction is tiny.
    use_vpu_fc1 = d_in <= 16

    # ---- wrapper-side layout plumbing -------------------------------------
    # Transposed weights (out_features, in_features) — nn.Linear's native layout.
    w1t = w1.T.astype(jnp.float32 if use_vpu_fc1 else matmul_dtype)
    w2t = w2.T.astype(matmul_dtype)
    w3t = w3.T.astype(matmul_dtype)

    # Pack the three biases into one (rows, 1) f32 column; segments start at
    # sublane-aligned (multiple-of-8) offsets so the in-kernel slices are aligned.
    o1 = 0
    o2 = o1 + _round_up(hidden, 8)
    o3 = o2 + _round_up(hidden, 8)
    n_bias = o3 + _round_up(out_dim, 8)
    b_all = jnp.zeros((n_bias,), jnp.float32)
    b_all = b_all.at[o1:o1 + hidden].set(b1.astype(jnp.float32))
    b_all = b_all.at[o2:o2 + hidden].set(b2.astype(jnp.float32))
    b_all = b_all.at[o3:o3 + out_dim].set(b3.astype(jnp.float32))
    b_all = b_all.reshape(n_bias, 1)

    # Batch is the lane axis: 128-aligned tiles; B <= tile_b -> single grid step.
    tile_b = _round_up(min(tile_b, _round_up(B, 128)), 128)
    b_pad = _round_up(B, tile_b)
    if b_pad != B:
        x = jnp.pad(x, ((0, b_pad - B), (0, 0)))
    xt = x.T.astype(jnp.float32 if use_vpu_fc1 else matmul_dtype)  # (d_in, b_pad)

    # ---- kernel ------------------------------------------------------------
    def kernel(x_ref, w1_ref, w2_ref, w3_ref, b_ref, o_ref):
        tb = x_ref.shape[1]
        b1c = b_ref[o1:o1 + hidden, :]        # (hidden, 1)
        b2c = b_ref[o2:o2 + hidden, :]        # (hidden, 1)
        b3c = b_ref[o3:o3 + out_dim, :]       # (out_dim, 1)

        # fc1 -> ReLU
        if use_vpu_fc1:
            xk = x_ref[...]                   # (d_in, tb) f32
            w1k = w1_ref[...]                 # (hidden, d_in) f32
            h1 = jnp.zeros((hidden, tb), jnp.float32)
            for k in range(d_in):             # unrolled outer-product FMAs (VPU)
                h1 = h1 + w1k[:, k:k + 1] * xk[k:k + 1, :]
        else:
            h1 = jnp.dot(w1_ref[...], x_ref[...],
                         preferred_element_type=jnp.float32)
        h1 = jnp.maximum(h1 + b1c, 0.0)

        # fc2 -> ReLU   (MXU: bf16 operands, f32 accumulation)
        h2 = jnp.dot(w2_ref[...], h1.astype(w2_ref.dtype),
                     preferred_element_type=jnp.float32)
        h2 = jnp.maximum(h2 + b2c, 0.0)

        # fc3 (no activation -> matches the PyTorch module)
        out = jnp.dot(w3_ref[...], h2.astype(w3_ref.dtype),
                      preferred_element_type=jnp.float32)
        o_ref[...] = (out + b3c).astype(o_ref.dtype)

    # ---- pallas_call -------------------------------------------------------
    def resident(shape):
        # Constant block index -> Pallas keeps the block VMEM-resident (no
        # re-DMA) across grid steps.  At much larger `hidden`, single-buffering
        # these (pipeline_mode=pl.Buffered(1)) would halve their footprint on
        # v7x's 64 MiB VMEM; unnecessary at hidden=128 (~66 KiB total).
        return pl.BlockSpec(shape, lambda i: (0, 0))

    nbytes = lambda a: int(a.size) * a.dtype.itemsize
    resident_bytes = 2 * (nbytes(w1t) + nbytes(w2t) + nbytes(w3t) + nbytes(b_all))
    stream_bytes = 2 * (d_in * tile_b * xt.dtype.itemsize + out_dim * tile_b * 4)
    work_bytes = 4 * hidden * tile_b * 4
    vmem_limit = int(min(resident_bytes + stream_bytes + work_bytes + (16 << 20),
                         64 << 20))

    out_t = pl.pallas_call(
        kernel,
        out_shape=jax.ShapeDtypeStruct((out_dim, b_pad), jnp.float32),
        grid=(b_pad // tile_b,),
        in_specs=[
            pl.BlockSpec((d_in, tile_b), lambda i: (0, i)),   # x streams over batch (lanes)
            resident((hidden, d_in)),                         # fc1 weight (f32, VPU path)
            resident((hidden, hidden)),                       # fc2 weight (bf16)
            resident((out_dim, hidden)),                      # fc3 weight (bf16)
            resident((n_bias, 1)),                            # packed biases (f32)
        ],
        out_specs=pl.BlockSpec((out_dim, tile_b), lambda i: (0, i)),
        compiler_params=pltpu.CompilerParams(
            dimension_semantics=("parallel",),
            vmem_limit_bytes=vmem_limit),
    )(xt, w1t, w2t, w3t, b_all)

    return out_t[:, :B].T                                     # (B, out_dim)


def init_linear_params(key, in_dim, out_dim):
    # Mimics nn.Linear's U(-1/sqrt(in), 1/sqrt(in)) init; weight kept as (in, out).
    kw, kb = jax.random.split(key)
    bound = 1.0 / jnp.sqrt(jnp.float32(in_dim))
    w = jax.random.uniform(kw, (in_dim, out_dim), jnp.float32, -bound, bound)
    b = jax.random.uniform(kb, (out_dim,), jnp.float32, -bound, bound)
    return w, b


if __name__ == "__main__":
    key = jax.random.PRNGKey(0)
    k_x, k1, k2, k3 = jax.random.split(key, 4)

    # Small shapes consistent with the module (RL state -> Q-values).
    batch, input_dim, hidden_dim, output_dim = 64, 4, 128, 8

    x = jax.random.normal(k_x, (batch, input_dim), jnp.float32)
    w1, b1 = init_linear_params(k1, input_dim, hidden_dim)
    w2, b2 = init_linear_params(k2, hidden_dim, hidden_dim)
    w3, b3 = init_linear_params(k3, hidden_dim, output_dim)

    # Default tile_b: the whole batch runs as a single grid step.
    out = mlp_forward(x, w1, b1, w2, b2, w3, b3)
    out = jax.block_until_ready(out)

    # Pure-JAX references: fc1 in f32 (kernel's VPU path) + dtype-matched fc2/fc3.
    def ref_fwd(mm_dtype):
        h1 = jnp.maximum(jnp.dot(x, w1) + b1, 0.0)
        h2 = jnp.maximum(
            jnp.dot(h1.astype(mm_dtype), w2.astype(mm_dtype),
                    preferred_element_type=jnp.float32) + b2, 0.0)
        return jnp.dot(h2.astype(mm_dtype), w3.astype(mm_dtype),
                       preferred_element_type=jnp.float32) + b3

    ref_match = ref_fwd(jnp.bfloat16)   # same bf16 MXU operands / f32 accumulate
    ref_f32 = ref_fwd(jnp.float32)      # full-precision module semantics

    assert out.shape == (batch, output_dim)
    assert jnp.allclose(out, ref_match, atol=1e-2, rtol=1e-2)
    assert jnp.allclose(out, ref_f32, atol=5e-2, rtol=5e-2)

    print("KERNEL_OK")
</pallas_src>

<mosaic_0001>
module attributes {stable_mosaic.version = 11 : i64} {
  func.func @kernel(%arg0: i32, %arg1: memref<4x128xf32, #tpu.memory_space<vmem>>, %arg2: memref<128x4xf32, #tpu.memory_space<vmem>>, %arg3: memref<128x128xbf16, #tpu.memory_space<vmem>>, %arg4: memref<8x128xbf16, #tpu.memory_space<vmem>>, %arg5: memref<264x1xf32, #tpu.memory_space<vmem>>, %arg6: memref<8x128xf32, #tpu.memory_space<vmem>>) attributes {dimension_semantics = [#tpu.dimension_semantics<parallel>], iteration_bounds = array<i64: 1>, scalar_prefetch = 0 : i64, scratch_operands = 0 : i64, tpu.core_type = #tpu.core_type<tc>, window_params = [{transform_indices = @transform_0, window_bounds = array<i64: 4, 128>}, {pipeline_mode = #tpu.pipeline_mode<synchronous>, transform_indices = @transform_1, window_bounds = array<i64: 128, 4>}, {pipeline_mode = #tpu.pipeline_mode<synchronous>, transform_indices = @transform_2, window_bounds = array<i64: 128, 128>}, {pipeline_mode = #tpu.pipeline_mode<synchronous>, transform_indices = @transform_3, window_bounds = array<i64: 8, 128>}, {pipeline_mode = #tpu.pipeline_mode<synchronous>, transform_indices = @transform_4, window_bounds = array<i64: 264, 1>}, {transform_indices = @transform_5, window_bounds = array<i64: 8, 128>}]} {
    %c0 = arith.constant 0 : index
    %c0_0 = arith.constant 0 : index
    %0 = vector.load %arg5[%c0, %c0_0] : memref<264x1xf32, #tpu.memory_space<vmem>>, vector<128x1xf32>
    %c128 = arith.constant 128 : index
    %c0_1 = arith.constant 0 : index
    %1 = vector.load %arg5[%c128, %c0_1] : memref<264x1xf32, #tpu.memory_space<vmem>>, vector<128x1xf32>
    %c256 = arith.constant 256 : index
    %c0_2 = arith.constant 0 : index
    %2 = vector.load %arg5[%c256, %c0_2] : memref<264x1xf32, #tpu.memory_space<vmem>>, vector<8x1xf32>
    %c0_3 = arith.constant 0 : index
    %c0_4 = arith.constant 0 : index
    %3 = vector.load %arg1[%c0_3, %c0_4] : memref<4x128xf32, #tpu.memory_space<vmem>>, vector<4x128xf32>
    %c0_5 = arith.constant 0 : index
    %c0_6 = arith.constant 0 : index
    %4 = vector.load %arg2[%c0_5, %c0_6] : memref<128x4xf32, #tpu.memory_space<vmem>>, vector<128x4xf32>
    %cst = arith.constant 0.000000e+00 : f32
    %5 = vector.broadcast %cst : f32 to vector<128x128xf32>
    %6 = vector.extract_strided_slice %4 {offsets = [0, 0], sizes = [128, 1], strides = [1, 1]} : vector<128x4xf32> to vector<128x1xf32>
    %7 = vector.extract_strided_slice %3 {offsets = [0, 0], sizes = [1, 128], strides = [1, 1]} : vector<4x128xf32> to vector<1x128xf32>
    %8 = vector.broadcast %6 : vector<128x1xf32> to vector<128x128xf32>
    %9 = vector.broadcast %7 : vector<1x128xf32> to vector<128x128xf32>
    %10 = arith.mulf %8, %9 : vector<128x128xf32>
    %11 = arith.addf %5, %10 : vector<128x128xf32>
    %12 = vector.extract_strided_slice %4 {offsets = [0, 1], sizes = [128, 1], strides = [1, 1]} : vector<128x4xf32> to vector<128x1xf32>
    %13 = vector.extract_strided_slice %3 {offsets = [1, 0], sizes = [1, 128], strides = [1, 1]} : vector<4x128xf32> to vector<1x128xf32>
    %14 = vector.broadcast %12 : vector<128x1xf32> to vector<128x128xf32>
    %15 = vector.broadcast %13 : vector<1x128xf32> to vector<128x128xf32>
    %16 = arith.mulf %14, %15 : vector<128x128xf32>
    %17 = arith.addf %11, %16 : vector<128x128xf32>
    %18 = vector.extract_strided_slice %4 {offsets = [0, 2], sizes = [128, 1], strides = [1, 1]} : vector<128x4xf32> to vector<128x1xf32>
    %19 = vector.extract_strided_slice %3 {offsets = [2, 0], sizes = [1, 128], strides = [1, 1]} : vector<4x128xf32> to vector<1x128xf32>
    %20 = vector.broadcast %18 : vector<128x1xf32> to vector<128x128xf32>
    %21 = vector.broadcast %19 : vector<1x128xf32> to vector<128x128xf32>
    %22 = arith.mulf %20, %21 : vector<128x128xf32>
    %23 = arith.addf %17, %22 : vector<128x128xf32>
    %24 = vector.extract_strided_slice %4 {offsets = [0, 3], sizes = [128, 1], strides = [1, 1]} : vector<128x4xf32> to vector<128x1xf32>
    %25 = vector.extract_strided_slice %3 {offsets = [3, 0], sizes = [1, 128], strides = [1, 1]} : vector<4x128xf32> to vector<1x128xf32>
    %26 = vector.broadcast %24 : vector<128x1xf32> to vector<128x128xf32>
    %27 = vector.broadcast %25 : vector<1x128xf32> to vector<128x128xf32>
    %28 = arith.mulf %26, %27 : vector<128x128xf32>
    %29 = arith.addf %23, %28 : vector<128x128xf32>
    %30 = vector.broadcast %0 : vector<128x1xf32> to vector<128x128xf32>
    %31 = arith.addf %29, %30 : vector<128x128xf32>
    %cst_7 = arith.constant 0.000000e+00 : f32
    %32 = vector.broadcast %cst_7 : f32 to vector<128x128xf32>
    %33 = arith.maximumf %31, %32 : vector<128x128xf32>
    %c0_8 = arith.constant 0 : index
    %c0_9 = arith.constant 0 : index
    %34 = vector.load %arg3[%c0_8, %c0_9] : memref<128x128xbf16, #tpu.memory_space<vmem>>, vector<128x128xbf16>
    %35 = arith.truncf %33 : vector<128x128xf32> to vector<128x128xbf16>
    %cst_10 = arith.constant dense<0.000000e+00> : vector<128x128xf32>
    %36 = tpu.matmul %34, %35, %cst_10 {dimension_numbers = #tpu.dot_dimension_numbers<[1], [0], [0], [1], [0, 0, 1, 1], [], []>} : vector<128x128xbf16>, vector<128x128xbf16>, vector<128x128xf32> -> vector<128x128xf32>
    %37 = vector.broadcast %1 : vector<128x1xf32> to vector<128x128xf32>
    %38 = arith.addf %36, %37 : vector<128x128xf32>
    %cst_11 = arith.constant 0.000000e+00 : f32
    %39 = vector.broadcast %cst_11 : f32 to vector<128x128xf32>
    %40 = arith.maximumf %38, %39 : vector<128x128xf32>
    %c0_12 = arith.constant 0 : index
    %c0_13 = arith.constant 0 : index
    %41 = vector.load %arg4[%c0_12, %c0_13] : memref<8x128xbf16, #tpu.memory_space<vmem>>, vector<8x128xbf16>
    %42 = arith.truncf %40 : vector<128x128xf32> to vector<128x128xbf16>
    %cst_14 = arith.constant dense<0.000000e+00> : vector<8x128xf32>
    %43 = tpu.matmul %41, %42, %cst_14 {dimension_numbers = #tpu.dot_dimension_numbers<[1], [0], [0], [1], [0, 0, 1, 1], [], []>} : vector<8x128xbf16>, vector<128x128xbf16>, vector<8x128xf32> -> vector<8x128xf32>
    %44 = vector.broadcast %2 : vector<8x1xf32> to vector<8x128xf32>
    %45 = arith.addf %43, %44 : vector<8x128xf32>
    %c0_15 = arith.constant 0 : index
    %c0_16 = arith.constant 0 : index
    %46 = vector.load %arg6[%c0_15, %c0_16] : memref<8x128xf32, #tpu.memory_space<vmem>>, vector<8x128xf32>
    tpu.vector_store %arg6[%c0_15, %c0_16], %45 {strides = array<i32>} : memref<8x128xf32, #tpu.memory_space<vmem>>, vector<8x128xf32>,
    return
  }
  func.func @transform_0(%arg0: i32) -> (i32, i32) {
    %c0_i32 = arith.constant 0 : i32
    %c0_i32_0 = arith.constant 0 : i32
    return %c0_i32, %arg0 : i32, i32
  }
  func.func @transform_1(%arg0: i32) -> (i32, i32) {
    %c0_i32 = arith.constant 0 : i32
    %c0_i32_0 = arith.constant 0 : i32
    %c0_i32_1 = arith.constant 0 : i32
    return %c0_i32, %c0_i32_0 : i32, i32
  }
  func.func @transform_2(%arg0: i32) -> (i32, i32) {
    %c0_i32 = arith.constant 0 : i32
    %c0_i32_0 = arith.constant 0 : i32
    %c0_i32_1 = arith.constant 0 : i32
    return %c0_i32, %c0_i32_0 : i32, i32
  }
  func.func @transform_3(%arg0: i32) -> (i32, i32) {
    %c0_i32 = arith.constant 0 : i32
    %c0_i32_0 = arith.constant 0 : i32
    %c0_i32_1 = arith.constant 0 : i32
    return %c0_i32, %c0_i32_0 : i32, i32
  }
  func.func @transform_4(%arg0: i32) -> (i32, i32) {
    %c0_i32 = arith.constant 0 : i32
    %c0_i32_0 = arith.constant 0 : i32
    %c0_i32_1 = arith.constant 0 : i32
    return %c0_i32, %c0_i32_0 : i32, i32
  }
  func.func @transform_5(%arg0: i32) -> (i32, i32) {
    %c0_i32 = arith.constant 0 : i32
    %c0_i32_0 = arith.constant 0 : i32
    return %c0_i32, %arg0 : i32, i32
  }
}

</mosaic_0001>

<llo_original>
// kernel: tpu_custom_call.1
$region0: #{tpu_custom_call.1}
  #allocation0 [shape = 'u32[]', space=smem, size = 0x4, offset = 0x4, fixed_abs, tag = 'smem constant byte address 0x4 - core index']
  #allocation1 [shape = 'u32[144,128]{1,0:T(1,128)}', space=vmem, size = 0x12000, scoped, tag = 'internal scratch']
  %s0 = inlined_call_operand.vmem [shape: f32[4,128], index: 0, kind: input, shape index: {}]
  %s1 = inlined_call_operand.vmem [shape: f32[128,4], index: 1, kind: input, shape index: {}]
  %s2 = inlined_call_operand.vmem [shape: bf16[128,128], index: 2, kind: input, shape index: {}]
  %s3 = inlined_call_operand.vmem [shape: bf16[8,128], index: 3, kind: input, shape index: {}]
  %s4 = inlined_call_operand.vmem [shape: f32[264,1], index: 4, kind: input, shape index: {}]
  %s5 = inlined_call_operand.hbm [shape: f32[8,128], index: 5, kind: output, shape index: {}]
  %s6 = sld [smem:[#allocation0]]
  $region30: #{tpu_custom_call.1} parent=0
    _
  %s8 = ssub.s32 1, %s6
  %s9 = scalar_select 0, %s8, %s6
  $region1: #{tpu_custom_call.1} parent=0
    #allocation2 [shape = 'u8[4096]{0}', space=vmem, size = 0x1000, scoped, tag = 'output window, operand 0, single buffered']
    #allocation3 [shape = 's32[1]{0}', space=sflag, size = 0x4, scoped, tag = 'scoped memory for tpu_custom_call.1']
    %10 = vsyncpa [#allocation3], 0
    // Predicated region
    $region2: #{tpu_custom_call.1} parent=1 // pred_check
      _
    $region3: #{tpu_custom_call.1} parent=1 // pred_check_branch
      %12 = sbr.rel (0) target = $region5
    $region4: #{tpu_custom_call.1} parent=1 // pred_region
      _
    $region5: #{tpu_custom_call.1} parent=1 // pred_fallthru
      _
    // Predicated region
    $region6: #{tpu_custom_call.1} parent=1 // pred_check
      _
    $region7: #{tpu_custom_call.1} parent=1 // pred_check_branch
      %14 = sbr.rel (0) target = $region9
    $region8: #{tpu_custom_call.1} parent=1 // pred_region
      _
    $region9: #{tpu_custom_call.1} parent=1 // pred_fallthru
      _
    // Predicated region
    $region10: #{tpu_custom_call.1} parent=1 // pred_check
      _
    $region11: #{tpu_custom_call.1} parent=1 // pred_check_branch
      %16 = sbr.rel (0) target = $region13
    $region12: #{tpu_custom_call.1} parent=1 // pred_region
      _
    $region13: #{tpu_custom_call.1} parent=1 // pred_fallthru
      _
    // Predicated region
    $region14: #{tpu_custom_call.1} parent=1 // pred_check
      _
    $region15: #{tpu_custom_call.1} parent=1 // pred_check_branch
      %18 = sbr.rel (0) target = $region17
    $region16: #{tpu_custom_call.1} parent=1 // pred_region
      _
    $region17: #{tpu_custom_call.1} parent=1 // pred_fallthru
      _
    // Predicated region
    $region18: #{tpu_custom_call.1} parent=1 // pred_check
      _
    $region19: #{tpu_custom_call.1} parent=1 // pred_check_branch
      %20 = sbr.rel (0) target = $region21
    $region20: #{tpu_custom_call.1} parent=1 // pred_region
      _
    $region21: #{tpu_custom_call.1} parent=1 // pred_fallthru
      _
    %v22 = vld [vmem:[%s4] sm:$0xff]
    %v23 = vld [vmem:[%s4 + $0x8] sm:$0xff]
    %v24 = vld [vmem:[%s4 + $0x10] sm:$0xff]
    %v25 = vld [vmem:[%s4 + $0x18] sm:$0xff]
    %v26 = vld [vmem:[%s4 + $0x20] sm:$0xff]
    %v27 = vld [vmem:[%s4 + $0x28] sm:$0xff]
    %v28 = vld [vmem:[%s4 + $0x30] sm:$0xff]
    %v29 = vld [vmem:[%s4 + $0x38] sm:$0xff]
    %v30 = vld [vmem:[%s4 + $0x40] sm:$0xff]
    %v31 = vld [vmem:[%s4 + $0x48] sm:$0xff]
    %v32 = vld [vmem:[%s4 + $0x50] sm:$0xff]
    %v33 = vld [vmem:[%s4 + $0x58] sm:$0xff]
    %v34 = vld [vmem:[%s4 + $0x60] sm:$0xff]
    %v35 = vld [vmem:[%s4 + $0x68] sm:$0xff]
    %v36 = vld [vmem:[%s4 + $0x70] sm:$0xff]
    %v37 = vld [vmem:[%s4 + $0x78] sm:$0xff]
    %v38 = vld [vmem:[%s4 + $0x80] sm:$0xff]
    %v39 = vld [vmem:[%s4 + $0x88] sm:$0xff]
    %v40 = vld [vmem:[%s4 + $0x90] sm:$0xff]
    %v41 = vld [vmem:[%s4 + $0x98] sm:$0xff]
    %v42 = vld [vmem:[%s4 + $0xa0] sm:$0xff]
    %v43 = vld [vmem:[%s4 + $0xa8] sm:$0xff]
    %v44 = vld [vmem:[%s4 + $0xb0] sm:$0xff]
    %v45 = vld [vmem:[%s4 + $0xb8] sm:$0xff]
    %v46 = vld [vmem:[%s4 + $0xc0] sm:$0xff]
    %v47 = vld [vmem:[%s4 + $0xc8] sm:$0xff]
    %v48 = vld [vmem:[%s4 + $0xd0] sm:$0xff]
    %v49 = vld [vmem:[%s4 + $0xd8] sm:$0xff]
    %v50 = vld [vmem:[%s4 + $0xe0] sm:$0xff]
    %v51 = vld [vmem:[%s4 + $0xe8] sm:$0xff]
    %v52 = vld [vmem:[%s4 + $0xf0] sm:$0xff]
    %v53 = vld [vmem:[%s4 + $0xf8] sm:$0xff]
    %v54 = vld [vmem:[%s4 + $0x100] sm:$0xff]
    %v55 = vld [vmem:[%s0] sm:$0xf]
    %v56 = vld [vmem:[%s1] sm:$0xff]
    %v57 = vld [vmem:[%s1 + $0x8] sm:$0xff]
    %v58 = vld [vmem:[%s1 + $0x10] sm:$0xff]
    %v59 = vld [vmem:[%s1 + $0x18] sm:$0xff]
    %v60 = vld [vmem:[%s1 + $0x20] sm:$0xff]
    %v61 = vld [vmem:[%s1 + $0x28] sm:$0xff]
    %v62 = vld [vmem:[%s1 + $0x30] sm:$0xff]
    %v63 = vld [vmem:[%s1 + $0x38] sm:$0xff]
    %v64 = vld [vmem:[%s1 + $0x40] sm:$0xff]
    %v65 = vld [vmem:[%s1 + $0x48] sm:$0xff]
    %v66 = vld [vmem:[%s1 + $0x50] sm:$0xff]
    %v67 = vld [vmem:[%s1 + $0x58] sm:$0xff]
    %v68 = vld [vmem:[%s1 + $0x60] sm:$0xff]
    %v69 = vld [vmem:[%s1 + $0x68] sm:$0xff]
    %v70 = vld [vmem:[%s1 + $0x70] sm:$0xff]
    %v71 = vld [vmem:[%s1 + $0x78] sm:$0xff]
    %73 = vset.pattern.permute.xlu0 0
    %74 = vperm.xlu0 %73, %v56
    %v75 = vpop.permute.xlu0 %74
    %78 = vset.pattern.permute.xlu0 0
    %79 = vperm.xlu0 %78, %v57
    %v80 = vpop.permute.xlu0 %79
    %83 = vset.pattern.permute.xlu0 0
    %84 = vperm.xlu0 %83, %v58
    %v85 = vpop.permute.xlu0 %84
    %88 = vset.pattern.permute.xlu0 0
    %89 = vperm.xlu0 %88, %v59
    %v90 = vpop.permute.xlu0 %89
    %93 = vset.pattern.permute.xlu0 0
    %94 = vperm.xlu0 %93, %v60
    %v95 = vpop.permute.xlu0 %94
    %98 = vset.pattern.permute.xlu0 0
    %99 = vperm.xlu0 %98, %v61
    %v100 = vpop.permute.xlu0 %99
    %103 = vset.pattern.permute.xlu0 0
    %104 = vperm.xlu0 %103, %v62
    %v105 = vpop.permute.xlu0 %104
    %108 = vset.pattern.permute.xlu0 0
    %109 = vperm.xlu0 %108, %v63
    %v110 = vpop.permute.xlu0 %109
    %113 = vset.pattern.permute.xlu0 0
    %114 = vperm.xlu0 %113, %v64
    %v115 = vpop.permute.xlu0 %114
    %118 = vset.pattern.permute.xlu0 0
    %119 = vperm.xlu0 %118, %v65
    %v120 = vpop.permute.xlu0 %119
    %123 = vset.pattern.permute.xlu0 0
    %124 = vperm.xlu0 %123, %v66
    %v125 = vpop.permute.xlu0 %124
    %128 = vset.pattern.permute.xlu0 0
    %129 = vperm.xlu0 %128, %v67
    %v130 = vpop.permute.xlu0 %129
    %133 = vset.pattern.permute.xlu0 0
    %134 = vperm.xlu0 %133, %v68
    %v135 = vpop.permute.xlu0 %134
    %138 = vset.pattern.permute.xlu0 0
    %139 = vperm.xlu0 %138, %v69
    %v140 = vpop.permute.xlu0 %139
    %143 = vset.pattern.permute.xlu0 0
    %144 = vperm.xlu0 %143, %v70
    %v145 = vpop.permute.xlu0 %144
    %148 = vset.pattern.permute.xlu0 0
    %149 = vperm.xlu0 %148, %v71
    %v150 = vpop.permute.xlu0 %149
    %v152 = vlaneseq
    %v153 = vshrl.u32 %v152, 7
    %v154 = vsub.s32 0, %v153
    %v155 = vrot.slane %v55, %v154
    %v156 = vmul.f32 %v75, %v155
    %v157 = vmul.f32 %v80, %v155
    %v158 = vmul.f32 %v85, %v155
    %v159 = vmul.f32 %v90, %v155
    %v160 = vmul.f32 %v95, %v155
    %v161 = vmul.f32 %v100, %v155
    %v162 = vmul.f32 %v105, %v155
    %v163 = vmul.f32 %v110, %v155
    %v164 = vmul.f32 %v115, %v155
    %v165 = vmul.f32 %v120, %v155
    %v166 = vmul.f32 %v125, %v155
    %v167 = vmul.f32 %v130, %v155
    %v168 = vmul.f32 %v135, %v155
    %v169 = vmul.f32 %v140, %v155
    %v170 = vmul.f32 %v145, %v155
    %v171 = vmul.f32 %v150, %v155
    %v172 = vadd.f32 %v156, 0.0
    %v173 = vadd.f32 %v157, 0.0
    %v174 = vadd.f32 %v158, 0.0
    %v175 = vadd.f32 %v159, 0.0
    %v176 = vadd.f32 %v160, 0.0
    %v177 = vadd.f32 %v161, 0.0
    %v178 = vadd.f32 %v162, 0.0
    %v179 = vadd.f32 %v163, 0.0
    %v180 = vadd.f32 %v164, 0.0
    %v181 = vadd.f32 %v165, 0.0
    %v182 = vadd.f32 %v166, 0.0
    %v183 = vadd.f32 %v167, 0.0
    %v184 = vadd.f32 %v168, 0.0
    %v185 = vadd.f32 %v169, 0.0
    %v186 = vadd.f32 %v170, 0.0
    %v187 = vadd.f32 %v171, 0.0
    %188 = vset.pattern.permute.xlu0 1
    %189 = vperm.xlu0 %188, %v56
    %v190 = vpop.permute.xlu0 %189
    %192 = vset.pattern.permute.xlu0 1
    %193 = vperm.xlu0 %192, %v57
    %v194 = vpop.permute.xlu0 %193
    %196 = vset.pattern.permute.xlu0 1
    %197 = vperm.xlu0 %196, %v58
    %v198 = vpop.permute.xlu0 %197
    %200 = vset.pattern.permute.xlu0 1
    %201 = vperm.xlu0 %200, %v59
    %v202 = vpop.permute.xlu0 %201
    %204 = vset.pattern.permute.xlu0 1
    %205 = vperm.xlu0 %204, %v60
    %v206 = vpop.permute.xlu0 %205
    %208 = vset.pattern.permute.xlu0 1
    %209 = vperm.xlu0 %208, %v61
    %v210 = vpop.permute.xlu0 %209
    %212 = vset.pattern.permute.xlu0 1
    %213 = vperm.xlu0 %212, %v62
    %v214 = vpop.permute.xlu0 %213
    %216 = vset.pattern.permute.xlu0 1
    %217 = vperm.xlu0 %216, %v63
    %v218 = vpop.permute.xlu0 %217
    %220 = vset.pattern.permute.xlu0 1
    %221 = vperm.xlu0 %220, %v64
    %v222 = vpop.permute.xlu0 %221
    %224 = vset.pattern.permute.xlu0 1
    %225 = vperm.xlu0 %224, %v65
    %v226 = vpop.permute.xlu0 %225
    %228 = vset.pattern.permute.xlu0 1
    %229 = vperm.xlu0 %228, %v66
    %v230 = vpop.permute.xlu0 %229
    %232 = vset.pattern.permute.xlu0 1
    %233 = vperm.xlu0 %232, %v67
    %v234 = vpop.permute.xlu0 %233
    %236 = vset.pattern.permute.xlu0 1
    %237 = vperm.xlu0 %236, %v68
    %v238 = vpop.permute.xlu0 %237
    %240 = vset.pattern.permute.xlu0 1
    %241 = vperm.xlu0 %240, %v69
    %v242 = vpop.permute.xlu0 %241
    %244 = vset.pattern.permute.xlu0 1
    %245 = vperm.xlu0 %244, %v70
    %v246 = vpop.permute.xlu0 %245
    %248 = vset.pattern.permute.xlu0 1
    %249 = vperm.xlu0 %248, %v71
    %v250 = vpop.permute.xlu0 %249
    %v252 = vlaneseq
    %v253 = vshrl.u32 %v252, 7
    %v254 = vsub.s32 1, %v253
    %v255 = vrot.slane %v55, %v254
    %v256 = vmul.f32 %v190, %v255
    %v257 = vmul.f32 %v194, %v255
    %v258 = vmul.f32 %v198, %v255
    %v259 = vmul.f32 %v202, %v255
    %v260 = vmul.f32 %v206, %v255
    %v261 = vmul.f32 %v210, %v255
    %v262 = vmul.f32 %v214, %v255
    %v263 = vmul.f32 %v218, %v255
    %v264 = vmul.f32 %v222, %v255
    %v265 = vmul.f32 %v226, %v255
    %v266 = vmul.f32 %v230, %v255
    %v267 = vmul.f32 %v234, %v255
    %v268 = vmul.f32 %v238, %v255
    %v269 = vmul.f32 %v242, %v255
    %v270 = vmul.f32 %v246, %v255
    %v271 = vmul.f32 %v250, %v255
    %v272 = vadd.f32 %v172, %v256
    %v273 = vadd.f32 %v173, %v257
    %v274 = vadd.f32 %v174, %v258
    %v275 = vadd.f32 %v175, %v259
    %v276 = vadd.f32 %v176, %v260
    %v277 = vadd.f32 %v177, %v261
    %v278 = vadd.f32 %v178, %v262
    %v279 = vadd.f32 %v179, %v263
    %v280 = vadd.f32 %v180, %v264
    %v281 = vadd.f32 %v181, %v265
    %v282 = vadd.f32 %v182, %v266
    %v283 = vadd.f32 %v183, %v267
    %v284 = vadd.f32 %v184, %v268
    %v285 = vadd.f32 %v185, %v269
    %v286 = vadd.f32 %v186, %v270
    %v287 = vadd.f32 %v187, %v271
    %288 = vset.pattern.permute.xlu0 2
    %289 = vperm.xlu0 %288, %v56
    %v290 = vpop.permute.xlu0 %289
    %292 = vset.pattern.permute.xlu0 2
    %293 = vperm.xlu0 %292, %v57
    %v294 = vpop.permute.xlu0 %293
    %296 = vset.pattern.permute.xlu0 2
    %297 = vperm.xlu0 %296, %v58
    %v298 = vpop.permute.xlu0 %297
    %300 = vset.pattern.permute.xlu0 2
    %301 = vperm.xlu0 %300, %v59
    %v302 = vpop.permute.xlu0 %301
    %304 = vset.pattern.permute.xlu0 2
    %305 = vperm.xlu0 %304, %v60
    %v306 = vpop.permute.xlu0 %305
    %308 = vset.pattern.permute.xlu0 2
    %309 = vperm.xlu0 %308, %v61
    %v310 = vpop.permute.xlu0 %309
    %312 = vset.pattern.permute.xlu0 2
    %313 = vperm.xlu0 %312, %v62
    %v314 = vpop.permute.xlu0 %313
    %316 = vset.pattern.permute.xlu0 2
    %317 = vperm.xlu0 %316, %v63
    %v318 = vpop.permute.xlu0 %317
    %320 = vset.pattern.permute.xlu0 2
    %321 = vperm.xlu0 %320, %v64
    %v322 = vpop.permute.xlu0 %321
    %324 = vset.pattern.permute.xlu0 2
    %325 = vperm.xlu0 %324, %v65
    %v326 = vpop.permute.xlu0 %325
    %328 = vset.pattern.permute.xlu0 2
    %329 = vperm.xlu0 %328, %v66
    %v330 = vpop.permute.xlu0 %329
    %332 = vset.pattern.permute.xlu0 2
    %333 = vperm.xlu0 %332, %v67
    %v334 = vpop.permute.xlu0 %333
    %336 = vset.pattern.permute.xlu0 2
    %337 = vperm.xlu0 %336, %v68
    %v338 = vpop.permute.xlu0 %337
    %340 = vset.pattern.permute.xlu0 2
    %341 = vperm.xlu0 %340, %v69
    %v342 = vpop.permute.xlu0 %341
    %344 = vset.pattern.permute.xlu0 2
    %345 = vperm.xlu0 %344, %v70
    %v346 = vpop.permute.xlu0 %345
    %348 = vset.pattern.permute.xlu0 2
    %349 = vperm.xlu0 %348, %v71
    %v350 = vpop.permute.xlu0 %349
    %v352 = vlaneseq
    %v353 = vshrl.u32 %v352, 7
    %v354 = vsub.s32 2, %v353
    %v355 = vrot.slane %v55, %v354
    %v356 = vmul.f32 %v290, %v355
    %v357 = vmul.f32 %v294, %v355
    %v358 = vmul.f32 %v298, %v355
    %v359 = vmul.f32 %v302, %v355
    %v360 = vmul.f32 %v306, %v355
    %v361 = vmul.f32 %v310, %v355
    %v362 = vmul.f32 %v314, %v355
    %v363 = vmul.f32 %v318, %v355
    %v364 = vmul.f32 %v322, %v355
    %v365 = vmul.f32 %v326, %v355
    %v366 = vmul.f32 %v330, %v355
    %v367 = vmul.f32 %v334, %v355
    %v368 = vmul.f32 %v338, %v355
    %v369 = vmul.f32 %v342, %v355
    %v370 = vmul.f32 %v346, %v355
    %v371 = vmul.f32 %v350, %v355
    %v372 = vadd.f32 %v272, %v356
    %v373 = vadd.f32 %v273, %v357
    %v374 = vadd.f32 %v274, %v358
    %v375 = vadd.f32 %v275, %v359
    %v376 = vadd.f32 %v276, %v360
    %v377 = vadd.f32 %v277, %v361
    %v378 = vadd.f32 %v278, %v362
    %v379 = vadd.f32 %v279, %v363
    %v380 = vadd.f32 %v280, %v364
    %v381 = vadd.f32 %v281, %v365
    %v382 = vadd.f32 %v282, %v366
    %v383 = vadd.f32 %v283, %v367
    %v384 = vadd.f32 %v284, %v368
    %v385 = vadd.f32 %v285, %v369
    %v386 = vadd.f32 %v286, %v370
    %v387 = vadd.f32 %v287, %v371
    %388 = vset.pattern.permute.xlu0 3
    %389 = vperm.xlu0 %388, %v56
    %v390 = vpop.permute.xlu0 %389
    %392 = vset.pattern.permute.xlu0 3
    %393 = vperm.xlu0 %392, %v57
    %v394 = vpop.permute.xlu0 %393
    %396 = vset.pattern.permute.xlu0 3
    %397 = vperm.xlu0 %396, %v58
    %v398 = vpop.permute.xlu0 %397
    %400 = vset.pattern.permute.xlu0 3
    %401 = vperm.xlu0 %400, %v59
    %v402 = vpop.permute.xlu0 %401
    %404 = vset.pattern.permute.xlu0 3
    %405 = vperm.xlu0 %404, %v60
    %v406 = vpop.permute.xlu0 %405
    %408 = vset.pattern.permute.xlu0 3
    %409 = vperm.xlu0 %408, %v61
    %v410 = vpop.permute.xlu0 %409
    %412 = vset.pattern.permute.xlu0 3
    %413 = vperm.xlu0 %412, %v62
    %v414 = vpop.permute.xlu0 %413
    %416 = vset.pattern.permute.xlu0 3
    %417 = vperm.xlu0 %416, %v63
    %v418 = vpop.permute.xlu0 %417
    %420 = vset.pattern.permute.xlu0 3
    %421 = vperm.xlu0 %420, %v64
    %v422 = vpop.permute.xlu0 %421
    %424 = vset.pattern.permute.xlu0 3
    %425 = vperm.xlu0 %424, %v65
    %v426 = vpop.permute.xlu0 %425
    %428 = vset.pattern.permute.xlu0 3
    %429 = vperm.xlu0 %428, %v66
    %v430 = vpop.permute.xlu0 %429
    %432 = vset.pattern.permute.xlu0 3
    %433 = vperm.xlu0 %432, %v67
    %v434 = vpop.permute.xlu0 %433
    %436 = vset.pattern.permute.xlu0 3
    %437 = vperm.xlu0 %436, %v68
    %v438 = vpop.permute.xlu0 %437
    %440 = vset.pattern.permute.xlu0 3
    %441 = vperm.xlu0 %440, %v69
    %v442 = vpop.permute.xlu0 %441
    %444 = vset.pattern.permute.xlu0 3
    %445 = vperm.xlu0 %444, %v70
    %v446 = vpop.permute.xlu0 %445
    %448 = vset.pattern.permute.xlu0 3
    %449 = vperm.xlu0 %448, %v71
    %v450 = vpop.permute.xlu0 %449
    %v452 = vlaneseq
    %v453 = vshrl.u32 %v452, 7
    %v454 = vsub.s32 3, %v453
    %v455 = vrot.slane %v55, %v454
    %v456 = vmul.f32 %v390, %v455
    %v457 = vmul.f32 %v394, %v455
    %v458 = vmul.f32 %v398, %v455
    %v459 = vmul.f32 %v402, %v455
    %v460 = vmul.f32 %v406, %v455
    %v461 = vmul.f32 %v410, %v455
    %v462 = vmul.f32 %v414, %v455
    %v463 = vmul.f32 %v418, %v455
    %v464 = vmul.f32 %v422, %v455
    %v465 = vmul.f32 %v426, %v455
    %v466 = vmul.f32 %v430, %v455
    %v467 = vmul.f32 %v434, %v455
    %v468 = vmul.f32 %v438, %v455
    %v469 = vmul.f32 %v442, %v455
    %v470 = vmul.f32 %v446, %v455
    %v471 = vmul.f32 %v450, %v455
    %v472 = vadd.f32 %v372, %v456
    %v473 = vadd.f32 %v373, %v457
    %v474 = vadd.f32 %v374, %v458
    %v475 = vadd.f32 %v375, %v459
    %v476 = vadd.f32 %v376, %v460
    %v477 = vadd.f32 %v377, %v461
    %v478 = vadd.f32 %v378, %v462
    %v479 = vadd.f32 %v379, %v463
    %v480 = vadd.f32 %v380, %v464
    %v481 = vadd.f32 %v381, %v465
    %v482 = vadd.f32 %v382, %v466
    %v483 = vadd.f32 %v383, %v467
    %v484 = vadd.f32 %v384, %v468
    %v485 = vadd.f32 %v385, %v469
    %v486 = vadd.f32 %v386, %v470
    %v487 = vadd.f32 %v387, %v471
    %489 = vset.pattern.permute.xlu0 0
    %490 = vperm.xlu0 %489, %v22
    %v491 = vpop.permute.xlu0 %490
    %494 = vset.pattern.permute.xlu0 0
    %495 = vperm.xlu0 %494, %v23
    %v496 = vpop.permute.xlu0 %495
    %499 = vset.pattern.permute.xlu0 0
    %500 = vperm.xlu0 %499, %v24
    %v501 = vpop.permute.xlu0 %500
    %504 = vset.pattern.permute.xlu0 0
    %505 = vperm.xlu0 %504, %v25
    %v506 = vpop.permute.xlu0 %505
    %509 = vset.pattern.permute.xlu0 0
    %510 = vperm.xlu0 %509, %v26
    %v511 = vpop.permute.xlu0 %510
    %514 = vset.pattern.permute.xlu0 0
    %515 = vperm.xlu0 %514, %v27
    %v516 = vpop.permute.xlu0 %515
    %519 = vset.pattern.permute.xlu0 0
    %520 = vperm.xlu0 %519, %v28
    %v521 = vpop.permute.xlu0 %520
    %524 = vset.pattern.permute.xlu0 0
    %525 = vperm.xlu0 %524, %v29
    %v526 = vpop.permute.xlu0 %525
    %529 = vset.pattern.permute.xlu0 0
    %530 = vperm.xlu0 %529, %v30
    %v531 = vpop.permute.xlu0 %530
    %534 = vset.pattern.permute.xlu0 0
    %535 = vperm.xlu0 %534, %v31
    %v536 = vpop.permute.xlu0 %535
    %539 = vset.pattern.permute.xlu0 0
    %540 = vperm.xlu0 %539, %v32
    %v541 = vpop.permute.xlu0 %540
    %544 = vset.pattern.permute.xlu0 0
    %545 = vperm.xlu0 %544, %v33
    %v546 = vpop.permute.xlu0 %545
    %549 = vset.pattern.permute.xlu0 0
    %550 = vperm.xlu0 %549, %v34
    %v551 = vpop.permute.xlu0 %550
    %554 = vset.pattern.permute.xlu0 0
    %555 = vperm.xlu0 %554, %v35
    %v556 = vpop.permute.xlu0 %555
    %559 = vset.pattern.permute.xlu0 0
    %560 = vperm.xlu0 %559, %v36
    %v561 = vpop.permute.xlu0 %560
    %564 = vset.pattern.permute.xlu0 0
    %565 = vperm.xlu0 %564, %v37
    %v566 = vpop.permute.xlu0 %565
    %v568 = vadd.f32 %v472, %v491
    %v569 = vadd.f32 %v473, %v496
    %v570 = vadd.f32 %v474, %v501
    %v571 = vadd.f32 %v475, %v506
    %v572 = vadd.f32 %v476, %v511
    %v573 = vadd.f32 %v477, %v516
    %v574 = vadd.f32 %v478, %v521
    %v575 = vadd.f32 %v479, %v526
    %v576 = vadd.f32 %v480, %v531
    %v577 = vadd.f32 %v481, %v536
    %v578 = vadd.f32 %v482, %v541
    %v579 = vadd.f32 %v483, %v546
    %v580 = vadd.f32 %v484, %v551
    %v581 = vadd.f32 %v485, %v556
    %v582 = vadd.f32 %v486, %v561
    %v583 = vadd.f32 %v487, %v566
    %v584 = vmax.f32 %v568, 0.0
    %v585 = vmax.f32 %v569, 0.0
    %v586 = vmax.f32 %v570, 0.0
    %v587 = vmax.f32 %v571, 0.0
    %v588 = vmax.f32 %v572, 0.0
    %v589 = vmax.f32 %v573, 0.0
    %v590 = vmax.f32 %v574, 0.0
    %v591 = vmax.f32 %v575, 0.0
    %v592 = vmax.f32 %v576, 0.0
    %v593 = vmax.f32 %v577, 0.0
    %v594 = vmax.f32 %v578, 0.0
    %v595 = vmax.f32 %v579, 0.0
    %v596 = vmax.f32 %v580, 0.0
    %v597 = vmax.f32 %v581, 0.0
    %v598 = vmax.f32 %v582, 0.0
    %v599 = vmax.f32 %v583, 0.0
    %v600 = vld [vmem:[%s2] sm:$0xf]
    %v601 = vld [vmem:[%s2 + $0x4] sm:$0xf]
    %v602 = vld [vmem:[%s2 + $0x8] sm:$0xf]
    %v603 = vld [vmem:[%s2 + $0xc] sm:$0xf]
    %v604 = vld [vmem:[%s2 + $0x10] sm:$0xf]
    %v605 = vld [vmem:[%s2 + $0x14] sm:$0xf]
    %v606 = vld [vmem:[%s2 + $0x18] sm:$0xf]
    %v607 = vld [vmem:[%s2 + $0x1c] sm:$0xf]
    %v608 = vld [vmem:[%s2 + $0x20] sm:$0xf]
    %v609 = vld [vmem:[%s2 + $0x24] sm:$0xf]
    %v610 = vld [vmem:[%s2 + $0x28] sm:$0xf]
    %v611 = vld [vmem:[%s2 + $0x2c] sm:$0xf]
    %v612 = vld [vmem:[%s2 + $0x30] sm:$0xf]
    %v613 = vld [vmem:[%s2 + $0x34] sm:$0xf]
    %v614 = vld [vmem:[%s2 + $0x38] sm:$0xf]
    %v615 = vld [vmem:[%s2 + $0x3c] sm:$0xf]
    %v616 = vpack.c.bf16 %v585, %v584
    %v617 = vpack.c.bf16 %v587, %v586
    %v618 = vpack.c.bf16 %v589, %v588
    %v619 = vpack.c.bf16 %v591, %v590
    %v620 = vpack.c.bf16 %v593, %v592
    %v621 = vpack.c.bf16 %v595, %v594
    %v622 = vpack.c.bf16 %v597, %v596
    %v623 = vpack.c.bf16 %v599, %v598
    %625 = vset.pattern.permute.xlu0 0
    %626 = vperm.xlu0 %625, %v38
    %v627 = vpop.permute.xlu0 %626
    %630 = vset.pattern.permute.xlu0 0
    %631 = vperm.xlu0 %630, %v39
    %v632 = vpop.permute.xlu0 %631
    %635 = vset.pattern.permute.xlu0 0
    %636 = vperm.xlu0 %635, %v40
    %v637 = vpop.permute.xlu0 %636
    %640 = vset.pattern.permute.xlu0 0
    %641 = vperm.xlu0 %640, %v41
    %v642 = vpop.permute.xlu0 %641
    %645 = vset.pattern.permute.xlu0 0
    %646 = vperm.xlu0 %645, %v42
    %v647 = vpop.permute.xlu0 %646
    %650 = vset.pattern.permute.xlu0 0
    %651 = vperm.xlu0 %650, %v43
    %v652 = vpop.permute.xlu0 %651
    %655 = vset.pattern.permute.xlu0 0
    %656 = vperm.xlu0 %655, %v44
    %v657 = vpop.permute.xlu0 %656
    %660 = vset.pattern.permute.xlu0 0
    %661 = vperm.xlu0 %660, %v45
    %v662 = vpop.permute.xlu0 %661
    %665 = vset.pattern.permute.xlu0 0
    %666 = vperm.xlu0 %665, %v46
    %v667 = vpop.permute.xlu0 %666
    %670 = vset.pattern.permute.xlu0 0
    %671 = vperm.xlu0 %670, %v47
    %v672 = vpop.permute.xlu0 %671
    %675 = vset.pattern.permute.xlu0 0
    %676 = vperm.xlu0 %675, %v48
    %v677 = vpop.permute.xlu0 %676
    %680 = vset.pattern.permute.xlu0 0
    %681 = vperm.xlu0 %680, %v49
    %v682 = vpop.permute.xlu0 %681
    %685 = vset.pattern.permute.xlu0 0
    %686 = vperm.xlu0 %685, %v50
    %v687 = vpop.permute.xlu0 %686
    %690 = vset.pattern.permute.xlu0 0
    %691 = vperm.xlu0 %690, %v51
    %v692 = vpop.permute.xlu0 %691
    %695 = vset.pattern.permute.xlu0 0
    %696 = vperm.xlu0 %695, %v52
    %v697 = vpop.permute.xlu0 %696
    %700 = vset.pattern.permute.xlu0 0
    %701 = vperm.xlu0 %700, %v53
    %v702 = vpop.permute.xlu0 %701
    %v720 = vunpack.c.l.b16 %v600
    %v721 = vunpack.c.l.b16 %v601
    %v722 = vunpack.c.l.b16 %v602
    %v723 = vunpack.c.l.b16 %v603
    %v724 = vunpack.c.l.b16 %v604
    %v725 = vunpack.c.l.b16 %v605
    %v726 = vunpack.c.l.b16 %v606
    %v727 = vunpack.c.l.b16 %v607
    %v728 = vunpack.c.l.b16 %v608
    %v729 = vunpack.c.l.b16 %v609
    %v730 = vunpack.c.l.b16 %v610
    %v731 = vunpack.c.l.b16 %v611
    %v732 = vunpack.c.l.b16 %v612
    %v733 = vunpack.c.l.b16 %v613
    %v734 = vunpack.c.l.b16 %v614
    %v735 = vunpack.c.l.b16 %v615
    %v736 = vpack.c.b16 %v721, %v720
    %v737 = vpack.c.b16 %v723, %v722
    %v738 = vpack.c.b16 %v725, %v724
    %v739 = vpack.c.b16 %v727, %v726
    %v740 = vpack.c.b16 %v729, %v728
    %v741 = vpack.c.b16 %v731, %v730
    %v742 = vpack.c.b16 %v733, %v732
    %v743 = vpack.c.b16 %v735, %v734
    %752 = vmatprep.subr.bf16.mxu0 0
    %753 = vmatpush1.bf16.msra.mxu0 %v616
    %754 = vmatprep.subr.bf16.mxu0 0
    %755 = vmatpush1.bf16.msra.mxu0 %v617
    %756 = vmatprep.subr.bf16.mxu0 0
    %757 = vmatpush1.bf16.msra.mxu0 %v618
    %758 = vmatprep.subr.bf16.mxu0 0
    %759 = vmatpush1.bf16.msra.mxu0 %v619
    %760 = vmatprep.subr.bf16.mxu0 0
    %761 = vmatpush1.bf16.msra.mxu0 %v620
    %762 = vmatprep.subr.bf16.mxu0 0
    %763 = vmatpush1.bf16.msra.mxu0 %v621
    %764 = vmatprep.subr.bf16.mxu0 0
    %765 = vmatpush1.bf16.msra.mxu0 %v622
    %766 = vmatprep.subr.bf16.mxu0 0
    %767 = vmatpush1.bf16.msra.mxu0 %v623
    %768 = vmatprep.subr.bf16.mxu0 0
    %769 = vmatpush1.bf16.msra.mxu0 0
    %770 = vmatprep.subr.bf16.mxu0 0
    %771 = vmatpush1.bf16.msra.mxu0 0
    %772 = vmatprep.subr.bf16.mxu0 0
    %773 = vmatpush1.bf16.msra.mxu0 0
    %774 = vmatprep.subr.bf16.mxu0 0
    %775 = vmatpush1.bf16.msra.mxu0 0
    %776 = vmatprep.subr.bf16.mxu0 0
    %777 = vmatpush1.bf16.msra.mxu0 0
    %778 = vmatprep.subr.bf16.mxu0 0
    %779 = vmatpush1.bf16.msra.mxu0 0
    %780 = vmatprep.subr.bf16.mxu0 0
    %781 = vmatpush1.bf16.msra.mxu0 0
    %782 = vmatprep.subr.bf16.mxu0 0
    %783 = vmatpush1.bf16.msra.mxu0 0
    %784 = vmatprep.mubr.bf16.mxu0 0
    %785 = vmatmul.mubr.bf16.gmra.mrb[0].mxu0 %v736
    %v786 = vpop.f32.mrb[0].mxu0
    %v787 = vadd.f32 %v627, %v786
    %v788 = vpop.f32.mrb[0].mxu0
    %v789 = vpop.f32.mrb[0].mxu0
    %v790 = vadd.f32 %v632, %v789
    %v791 = vpop.f32.mrb[0].mxu0
    %792 = vmatprep.mubr.bf16.mxu0 0
    %793 = vmatmul.mubr.bf16.gmra.mrb[0].mxu0 %v737
    %v794 = vpop.f32.mrb[0].mxu0
    %v795 = vadd.f32 %v637, %v794
    %v796 = vpop.f32.mrb[0].mxu0
    %v797 = vpop.f32.mrb[0].mxu0
    %v798 = vadd.f32 %v642, %v797
    %v799 = vpop.f32.mrb[0].mxu0
    %800 = vmatprep.mubr.bf16.mxu0 0
    %801 = vmatmul.mubr.bf16.gmra.mrb[0].mxu0 %v738
    %v802 = vpop.f32.mrb[0].mxu0
    %v803 = vadd.f32 %v647, %v802
    %v804 = vpop.f32.mrb[0].mxu0
    %v805 = vpop.f32.mrb[0].mxu0
    %v806 = vadd.f32 %v652, %v805
    %v807 = vpop.f32.mrb[0].mxu0
    %808 = vmatprep.mubr.bf16.mxu0 0
    %809 = vmatmul.mubr.bf16.gmra.mrb[0].mxu0 %v739
    %v810 = vpop.f32.mrb[0].mxu0
    %v811 = vadd.f32 %v657, %v810
    %v812 = vpop.f32.mrb[0].mxu0
    %v813 = vpop.f32.mrb[0].mxu0
    %v814 = vadd.f32 %v662, %v813
    %v815 = vpop.f32.mrb[0].mxu0
    %816 = vmatprep.mubr.bf16.mxu0 0
    %817 = vmatmul.mubr.bf16.gmra.mrb[0].mxu0 %v740
    %v818 = vpop.f32.mrb[0].mxu0
    %v819 = vadd.f32 %v667, %v818
    %v820 = vpop.f32.mrb[0].mxu0
    %v821 = vpop.f32.mrb[0].mxu0
    %v822 = vadd.f32 %v672, %v821
    %v823 = vpop.f32.mrb[0].mxu0
    %824 = vmatprep.mubr.bf16.mxu0 0
    %825 = vmatmul.mubr.bf16.gmra.mrb[0].mxu0 %v741
    %v826 = vpop.f32.mrb[0].mxu0
    %v827 = vadd.f32 %v677, %v826
    %v828 = vpop.f32.mrb[0].mxu0
    %v829 = vpop.f32.mrb[0].mxu0
    %v830 = vadd.f32 %v682, %v829
    %v831 = vpop.f32.mrb[0].mxu0
    %832 = vmatprep.mubr.bf16.mxu0 0
    %833 = vmatmul.mubr.bf16.gmra.mrb[0].mxu0 %v742
    %v834 = vpop.f32.mrb[0].mxu0
    %v835 = vadd.f32 %v687, %v834
    %v836 = vpop.f32.mrb[0].mxu0
    %v837 = vpop.f32.mrb[0].mxu0
    %v838 = vadd.f32 %v692, %v837
    %v839 = vpop.f32.mrb[0].mxu0
    %840 = vmatprep.mubr.bf16.mxu0 0
    %841 = vmatmul.mubr.bf16.gmra.mrb[0].mxu0 %v743
    %v842 = vpop.f32.mrb[0].mxu0
    %v843 = vadd.f32 %v697, %v842
    %v844 = vpop.f32.mrb[0].mxu0
    %v845 = vpop.f32.mrb[0].mxu0
    %v846 = vadd.f32 %v702, %v845
    %v847 = vpop.f32.mrb[0].mxu0
    %848 = vdwg.mxu0
    %v849 = vmax.f32 %v787, 0.0
    %v850 = vmax.f32 %v790, 0.0
    %v851 = vmax.f32 %v795, 0.0
    %v852 = vmax.f32 %v798, 0.0
    %v853 = vmax.f32 %v803, 0.0
    %v854 = vmax.f32 %v806, 0.0
    %v855 = vmax.f32 %v811, 0.0
    %v856 = vmax.f32 %v814, 0.0
    %v857 = vmax.f32 %v819, 0.0
    %v858 = vmax.f32 %v822, 0.0
    %v859 = vmax.f32 %v827, 0.0
    %v860 = vmax.f32 %v830, 0.0
    %v861 = vmax.f32 %v835, 0.0
    %v862 = vmax.f32 %v838, 0.0
    %v863 = vmax.f32 %v843, 0.0
    %v864 = vmax.f32 %v846, 0.0
    %v865 = vld [vmem:[%s3] sm:$0xf]
    %v866 = vpack.c.bf16 %v850, %v849
    %v867 = vpack.c.bf16 %v852, %v851
    %v868 = vpack.c.bf16 %v854, %v853
    %v869 = vpack.c.bf16 %v856, %v855
    %v870 = vpack.c.bf16 %v858, %v857
    %v871 = vpack.c.bf16 %v860, %v859
    %v872 = vpack.c.bf16 %v862, %v861
    %v873 = vpack.c.bf16 %v864, %v863
    %875 = vset.pattern.permute.xlu0 0
    %876 = vperm.xlu0 %875, %v54
    %v877 = vpop.permute.xlu0 %876
    %879 = vmatprep.subr.bf16.mxu0 0
    %880 = vmatpush1.bf16.msra.mxu0 %v866
    %881 = vmatprep.subr.bf16.mxu0 0
    %882 = vmatpush1.bf16.msra.mxu0 %v867
    %883 = vmatprep.subr.bf16.mxu0 0
    %884 = vmatpush1.bf16.msra.mxu0 %v868
    %885 = vmatprep.subr.bf16.mxu0 0
    %886 = vmatpush1.bf16.msra.mxu0 %v869
    %887 = vmatprep.subr.bf16.mxu0 0
    %888 = vmatpush1.bf16.msra.mxu0 %v870
    %889 = vmatprep.subr.bf16.mxu0 0
    %890 = vmatpush1.bf16.msra.mxu0 %v871
    %891 = vmatprep.subr.bf16.mxu0 0
    %892 = vmatpush1.bf16.msra.mxu0 %v872
    %893 = vmatprep.subr.bf16.mxu0 0
    %894 = vmatpush1.bf16.msra.mxu0 %v873
    %895 = vmatprep.subr.bf16.mxu0 0
    %896 = vmatpush1.bf16.msra.mxu0 0
    %897 = vmatprep.subr.bf16.mxu0 0
    %898 = vmatpush1.bf16.msra.mxu0 0
    %899 = vmatprep.subr.bf16.mxu0 0
    %900 = vmatpush1.bf16.msra.mxu0 0
    %901 = vmatprep.subr.bf16.mxu0 0
    %902 = vmatpush1.bf16.msra.mxu0 0
    %903 = vmatprep.subr.bf16.mxu0 0
    %904 = vmatpush1.bf16.msra.mxu0 0
    %905 = vmatprep.subr.bf16.mxu0 0
    %906 = vmatpush1.bf16.msra.mxu0 0
    %907 = vmatprep.subr.bf16.mxu0 0
    %908 = vmatpush1.bf16.msra.mxu0 0
    %909 = vmatprep.subr.bf16.mxu0 0
    %910 = vmatpush1.bf16.msra.mxu0 0
    %911 = vmatprep.mubr.bf16.mxu0 0
    %912 = vmatmul.mubr.bf16.gmra.mrb[0].mxu0 %v865
    %v913 = vpop.f32.mrb[0].mxu0
    %v914 = vadd.f32 %v877, %v913
    %v915 = vpop.f32.mrb[0].mxu0
    %v916 = vpop.f32.mrb[0].mxu0
    %v917 = vpop.f32.mrb[0].mxu0
    %918 = vdwg.mxu0
    %919 = vst [vmem:[#allocation2] sm:$0xff] %v914
    // Predicated region
    $region22: #{tpu_custom_call.1} parent=1 // pred_check
      _
    $region23: #{tpu_custom_call.1} parent=1 // pred_check_branch
      %921 = sbr.rel (0) target = $region25
    $region24: #{tpu_custom_call.1} parent=1 // pred_region
      %s923 = ssub.s32 128, 128
      %924 = vsyncadd [#allocation3], %s923
      %s926 = sshll.u32 [#allocation2], 4
      %s927 = int_to_ptr.vmem [resolvable:$true] %s926
      %929 = dma.vmem_to_hbm [thread:$0]  %s927, 128, %s5, [#allocation3]
    $region25: #{tpu_custom_call.1} parent=1 // pred_fallthru
      _
    // Predicated region
    $region26: #{tpu_custom_call.1} parent=1 // pred_check
      _
    $region27: #{tpu_custom_call.1} parent=1 // pred_check_branch
      %931 = sbr.rel (0) target = $region29
    $region28: #{tpu_custom_call.1} parent=1 // pred_region
      %932 = dma.done [#allocation3], 128
    $region29: #{tpu_custom_call.1} parent=1 // pred_fallthru
      _
    %933 = vsyncpa [#allocation3], 1

</llo_original>
